<compile_context>
chip_gen: v6e
topology: v6e:2x2x1
jax: 0.10.0
libtpu: 0.0.40
codegen_flags: <defaults>
</compile_context>

<pallas_src>
import jax
import jax.numpy as jnp
from jax.experimental import pallas as pl
from jax.experimental.pallas import tpu as pltpu


# ---------------------------------------------------------------------------
# Kernels
# ---------------------------------------------------------------------------
def cond_generator_kernel(noise_ref, w_ref, params_ref, out_ref):
    """Single-shot contraction: full Z per grid step."""
    # bf16 MXU matmul, f32 accumulation.
    acc = jnp.dot(noise_ref[...], w_ref[...], preferred_element_type=jnp.float32)
    # params rows: 0 = bias, 1 = mid, 2 = half (rows 3..7 are zero padding).
    signal = jnp.tanh(acc + params_ref[0:1, :])                     # (tm, tn) f32
    # mins + (signal + 1) * (maxs - mins) / 2  ==  mid + signal * half
    out_ref[...] = (params_ref[1:2, :] + signal * params_ref[2:3, :]).astype(out_ref.dtype)


def cond_generator_kernel_ksplit(noise_ref, w_ref, params_ref, out_ref, acc_ref):
    """Large-Z variant: K (contraction) grid axis last, f32 VMEM accumulator."""
    k = pl.program_id(2)

    @pl.when(k == 0)
    def _():
        acc_ref[...] = jnp.zeros_like(acc_ref)

    acc_ref[...] += jnp.dot(noise_ref[...], w_ref[...],
                            preferred_element_type=jnp.float32)

    @pl.when(k == pl.num_programs(2) - 1)
    def _():
        signal = jnp.tanh(acc_ref[...] + params_ref[0:1, :])
        out_ref[...] = (params_ref[1:2, :] + signal * params_ref[2:3, :]).astype(out_ref.dtype)


# ---------------------------------------------------------------------------
# One-time init (hoisted out of the per-call path)
# ---------------------------------------------------------------------------
def _round_up(x, m):
    return ((x + m - 1) // m) * m


_KSPLIT_Z_THRESHOLD = 2048     # split the contraction dim only when Z is large
_KSPLIT_TK = 512


def make_cond_generator_state(weight, bias, mins_c, maxs_c, C, T, *, force_tk=None):
    """Pre-pad / pre-cast all per-model constants exactly once.

    weight: (Z, H) f32; bias: (1, H) or (H,) f32; mins_c/maxs_c: (C,) f32."""
    Z, H = weight.shape
    assert H == C * T

    # H (lane) padding / output-tile width.
    if H <= 512:
        Hp = _round_up(H, 128)
        tn = Hp
    else:
        tn = 512                      # multiple of 256 (v6e/v7x MXU) and 128 (v5e)
        Hp = _round_up(H, tn)

    # Contraction-dim split decision (init-time so the weight is padded once).
    if force_tk is not None:
        tk = force_tk
    elif Z > _KSPLIT_Z_THRESHOLD:
        tk = _KSPLIT_TK
    else:
        tk = None
    Zp = Z if tk is None else _round_up(Z, tk)

    # Padded bf16 weight for the MXU (one-time HBM write).
    weight_p = jnp.zeros((Zp, Hp), jnp.bfloat16).at[:Z, :H].set(
        weight.astype(jnp.bfloat16))

    # Stacked (8, Hp) parameter slab: one sublane-dense DMA instead of three
    # 1-row DMAs.  Row 0 = bias, 1 = mid, 2 = half; rows 3..7 stay zero.
    half_c = (maxs_c - mins_c) * 0.5
    mid_c = (maxs_c + mins_c) * 0.5
    params = jnp.zeros((8, Hp), jnp.float32)
    params = params.at[0, :H].set(jnp.reshape(bias, (H,)).astype(jnp.float32))
    params = params.at[1, :H].set(jnp.repeat(mid_c, T).astype(jnp.float32))
    params = params.at[2, :H].set(jnp.repeat(half_c, T).astype(jnp.float32))

    return dict(weight=weight_p, params=params,
                Z=Z, Zp=Zp, H=H, Hp=Hp, tn=tn, tk=tk, C=C, T=T)


# ---------------------------------------------------------------------------
# Forward wrapper
# ---------------------------------------------------------------------------
def cond_generator(noise, state, *, out_dtype=jnp.float32):
    """noise: (B, Z) f32.  Returns (B, C, T) of out_dtype."""
    B, Z = noise.shape
    assert Z == state["Z"]
    Zp, H, Hp = state["Zp"], state["H"], state["Hp"]
    tn, tk = state["tn"], state["tk"]
    C, T = state["C"], state["T"]

    # Sublane tile: single tile up to 256 rows, else tm = 256 (fills the
    # 256x256 MXU rows on v6e/v7x; 2x128 passes on v5e's 128x128 MXU).
    if B <= 256:
        Bp = _round_up(B, 8)
        tm = Bp
    else:
        tm = 256
        Bp = _round_up(B, tm)

    noise_bf = noise.astype(jnp.bfloat16)
    if Bp != B or Zp != Z:
        noise_in = jnp.zeros((Bp, Zp), jnp.bfloat16).at[:B, :Z].set(noise_bf)
    else:
        noise_in = noise_bf           # no-pad fast path: no extra input copy

    n_h = Hp // tn
    n_b = Bp // tm

    out_bytes = Bp * Hp * jnp.dtype(out_dtype).itemsize
    cost = pl.CostEstimate(
        flops=2 * Bp * Hp * Zp,
        transcendentals=Bp * Hp,
        bytes_accessed=int(noise_in.size) * 2 + int(state["weight"].size) * 2
        + int(state["params"].size) * 4 + out_bytes,
    )

    if tk is None:
        out_p = pl.pallas_call(
            cond_generator_kernel,
            out_shape=jax.ShapeDtypeStruct((Bp, Hp), out_dtype),
            # H (weight-column) axis outer/slow, B axis inner/fast: each
            # (Zp, tn) weight tile stays VMEM-resident across consecutive
            # B tiles.  Both axes "parallel" -> v7x megacore can shard them.
            grid=(n_h, n_b),
            in_specs=[
                pl.BlockSpec((tm, Zp), lambda j, i: (i, 0)),   # noise  (bf16)
                pl.BlockSpec((Zp, tn), lambda j, i: (0, j)),   # weight (bf16)
                pl.BlockSpec((8, tn), lambda j, i: (0, j)),    # bias/mid/half (f32)
            ],
            out_specs=pl.BlockSpec((tm, tn), lambda j, i: (i, j)),
            compiler_params=pltpu.CompilerParams(
                dimension_semantics=("parallel", "parallel")),
            cost_estimate=cost,
        )(noise_in, state["weight"], state["params"])
    else:
        n_k = Zp // tk
        out_p = pl.pallas_call(
            cond_generator_kernel_ksplit,
            out_shape=jax.ShapeDtypeStruct((Bp, Hp), out_dtype),
            grid=(n_h, n_b, n_k),                              # K last, "arbitrary"
            in_specs=[
                pl.BlockSpec((tm, tk), lambda j, i, k: (i, k)),
                pl.BlockSpec((tk, tn), lambda j, i, k: (k, j)),
                pl.BlockSpec((8, tn), lambda j, i, k: (0, j)),
            ],
            out_specs=pl.BlockSpec((tm, tn), lambda j, i, k: (i, j)),
            scratch_shapes=[pltpu.VMEM((tm, tn), jnp.float32)],
            compiler_params=pltpu.CompilerParams(
                dimension_semantics=("parallel", "parallel", "arbitrary")),
            cost_estimate=cost,
        )(noise_in, state["weight"], state["params"])

    # Fast path skips the slice copy entirely when nothing was padded.
    if Bp != B or Hp != H:
        out_p = out_p[:B, :H]
    return out_p.reshape(B, C, T)


# ---------------------------------------------------------------------------
# Pure-JAX reference (original module semantics)
# ---------------------------------------------------------------------------
def reference(noise, weight, bias, mins_c, maxs_c, C, T, matmul_dtype=jnp.float32):
    B = noise.shape[0]
    H = C * T
    acc = jnp.dot(noise.astype(matmul_dtype), weight.astype(matmul_dtype),
                  preferred_element_type=jnp.float32)
    sig = jnp.tanh(acc + jnp.reshape(bias, (1, H)).astype(jnp.float32))
    mins_row = jnp.repeat(mins_c, T).reshape(1, H)
    maxs_row = jnp.repeat(maxs_c, T).reshape(1, H)
    res = mins_row + (sig + 1.0) * (maxs_row - mins_row) * 0.5
    return res.reshape(B, C, T)


if __name__ == "__main__":
    key = jax.random.PRNGKey(0)

    # -------------------- test 1: small shapes, padded path ----------------
    B, Z = 2, 32
    C, T = 4, 16
    H = C * T

    k_noise, k_w, k_b, k_n2, k_w2, k_b2 = jax.random.split(key, 6)
    noise = jax.random.normal(k_noise, (B, Z), dtype=jnp.float32)
    weight = jax.random.normal(k_w, (Z, H), dtype=jnp.float32) * (1.0 / jnp.sqrt(Z))
    bias = jax.random.normal(k_b, (1, H), dtype=jnp.float32) * 0.01
    mins_c = jnp.linspace(-1.0, 0.0, C, dtype=jnp.float32)
    maxs_c = jnp.linspace(2.0, 5.0, C, dtype=jnp.float32)

    state = make_cond_generator_state(weight, bias, mins_c, maxs_c, C, T)
    out = jax.block_until_ready(cond_generator(noise, state))
    assert out.shape == (B, C, T)

    ref_bf16 = reference(noise, weight, bias, mins_c, maxs_c, C, T,
                         matmul_dtype=jnp.bfloat16)
    assert jnp.allclose(out, ref_bf16, atol=1e-4, rtol=1e-4)
    ref_f32 = reference(noise, weight, bias, mins_c, maxs_c, C, T,
                        matmul_dtype=jnp.float32)
    assert jnp.allclose(out, ref_f32, atol=3e-2, rtol=3e-2)

    # bf16-output option (halved writeback), loose check.
    out_bf16 = jax.block_until_ready(
        cond_generator(noise, state, out_dtype=jnp.bfloat16))
    assert out_bf16.dtype == jnp.bfloat16
    assert jnp.allclose(out_bf16.astype(jnp.float32), ref_bf16, atol=5e-2, rtol=3e-2)

    # -------------------- test 2: no-pad fast path + K-split kernel --------
    B2, Z2 = 16, 256
    C2, T2 = 4, 32
    H2 = C2 * T2                       # 128 -> lane-aligned, no output slice
    noise2 = jax.random.normal(k_n2, (B2, Z2), dtype=jnp.float32)
    weight2 = jax.random.normal(k_w2, (Z2, H2), dtype=jnp.float32) * (1.0 / jnp.sqrt(Z2))
    bias2 = jax.random.normal(k_b2, (1, H2), dtype=jnp.float32) * 0.01
    mins2 = jnp.linspace(-2.0, 0.0, C2, dtype=jnp.float32)
    maxs2 = jnp.linspace(1.0, 4.0, C2, dtype=jnp.float32)

    state2 = make_cond_generator_state(weight2, bias2, mins2, maxs2, C2, T2,
                                       force_tk=128)     # exercise the K-split path
    out2 = jax.block_until_ready(cond_generator(noise2, state2))
    assert out2.shape == (B2, C2, T2)
    ref2 = reference(noise2, weight2, bias2, mins2, maxs2, C2, T2,
                     matmul_dtype=jnp.bfloat16)
    assert jnp.allclose(out2, ref2, atol=1e-3, rtol=1e-3)

    print("KERNEL_OK")
</pallas_src>

<mosaic_0001>
module attributes {stable_mosaic.version = 11 : i64} {
  func.func @cond_generator_kernel(%arg0: i32, %arg1: i32, %arg2: memref<8x32xbf16, #tpu.memory_space<vmem>>, %arg3: memref<32x128xbf16, #tpu.memory_space<vmem>>, %arg4: memref<8x128xf32, #tpu.memory_space<vmem>>, %arg5: memref<8x128xf32, #tpu.memory_space<vmem>>) attributes {dimension_semantics = [#tpu.dimension_semantics<parallel>, #tpu.dimension_semantics<parallel>], iteration_bounds = array<i64: 1, 1>, scalar_prefetch = 0 : i64, scratch_operands = 0 : i64, tpu.core_type = #tpu.core_type<tc>, window_params = [{transform_indices = @transform_0, window_bounds = array<i64: 8, 32>}, {transform_indices = @transform_1, window_bounds = array<i64: 32, 128>}, {transform_indices = @transform_2, window_bounds = array<i64: 8, 128>}, {transform_indices = @transform_3, window_bounds = array<i64: 8, 128>}]} {
    %c0 = arith.constant 0 : index
    %c0_0 = arith.constant 0 : index
    %0 = vector.load %arg2[%c0, %c0_0] : memref<8x32xbf16, #tpu.memory_space<vmem>>, vector<8x32xbf16>
    %c0_1 = arith.constant 0 : index
    %c0_2 = arith.constant 0 : index
    %1 = vector.load %arg3[%c0_1, %c0_2] : memref<32x128xbf16, #tpu.memory_space<vmem>>, vector<32x128xbf16>
    %cst = arith.constant dense<0.000000e+00> : vector<8x128xf32>
    %2 = tpu.matmul %0, %1, %cst {dimension_numbers = #tpu.dot_dimension_numbers<[1], [0], [0], [1], [0, 0, 1, 1], [], []>} : vector<8x32xbf16>, vector<32x128xbf16>, vector<8x128xf32> -> vector<8x128xf32>
    %c0_3 = arith.constant 0 : index
    %c0_4 = arith.constant 0 : index
    %3 = vector.load %arg4[%c0_3, %c0_4] : memref<8x128xf32, #tpu.memory_space<vmem>>, vector<1x128xf32>
    %4 = vector.broadcast %3 : vector<1x128xf32> to vector<8x128xf32>
    %5 = arith.addf %2, %4 : vector<8x128xf32>
    %6 = math.tanh %5 : vector<8x128xf32>
    %c1 = arith.constant 1 : index
    %c0_5 = arith.constant 0 : index
    %7 = vector.load %arg4[%c1, %c0_5] : memref<8x128xf32, #tpu.memory_space<vmem>>, vector<1x128xf32>
    %c2 = arith.constant 2 : index
    %c0_6 = arith.constant 0 : index
    %8 = vector.load %arg4[%c2, %c0_6] : memref<8x128xf32, #tpu.memory_space<vmem>>, vector<1x128xf32>
    %9 = vector.broadcast %8 : vector<1x128xf32> to vector<8x128xf32>
    %10 = arith.mulf %6, %9 : vector<8x128xf32>
    %11 = vector.broadcast %7 : vector<1x128xf32> to vector<8x128xf32>
    %12 = arith.addf %11, %10 : vector<8x128xf32>
    %c0_7 = arith.constant 0 : index
    %c0_8 = arith.constant 0 : index
    %13 = vector.load %arg5[%c0_7, %c0_8] : memref<8x128xf32, #tpu.memory_space<vmem>>, vector<8x128xf32>
    tpu.vector_store %arg5[%c0_7, %c0_8], %12 {strides = array<i32>} : memref<8x128xf32, #tpu.memory_space<vmem>>, vector<8x128xf32>,
    return
  }
  func.func @transform_0(%arg0: i32, %arg1: i32) -> (i32, i32) {
    %c0_i32 = arith.constant 0 : i32
    %c0_i32_0 = arith.constant 0 : i32
    return %arg1, %c0_i32 : i32, i32
  }
  func.func @transform_1(%arg0: i32, %arg1: i32) -> (i32, i32) {
    %c0_i32 = arith.constant 0 : i32
    %c0_i32_0 = arith.constant 0 : i32
    return %c0_i32, %arg0 : i32, i32
  }
  func.func @transform_2(%arg0: i32, %arg1: i32) -> (i32, i32) {
    %c0_i32 = arith.constant 0 : i32
    %c0_i32_0 = arith.constant 0 : i32
    return %c0_i32, %arg0 : i32, i32
  }
  func.func @transform_3(%arg0: i32, %arg1: i32) -> (i32, i32) {
    %c0_i32 = arith.constant 0 : i32
    return %arg1, %arg0 : i32, i32
  }
}

</mosaic_0001>

<llo_original>
// kernel: tpu_custom_call.1
$region0: #{tpu_custom_call.1}
  #allocation0 [shape = 'u32[]', space=smem, size = 0x4, offset = 0x4, fixed_abs, tag = 'smem constant byte address 0x4 - core index']
  #allocation1 [shape = 'u32[144,128]{1,0:T(1,128)}', space=vmem, size = 0x12000, scoped, tag = 'internal scratch']
  %s0 = inlined_call_operand.hbm [shape: bf16[8,32], index: 0, kind: input, shape index: {}]
  %s1 = inlined_call_operand.hbm [shape: bf16[32,128], index: 1, kind: input, shape index: {}]
  %s2 = inlined_call_operand.hbm [shape: f32[8,128], index: 2, kind: input, shape index: {}]
  %s3 = inlined_call_operand.hbm [shape: f32[8,128], index: 3, kind: output, shape index: {}]
  %s4 = sld [smem:[#allocation0]]
  $region34: #{tpu_custom_call.1} parent=0
    _
  %s6 = ssub.s32 1, %s4
  %s7 = scalar_select 0, %s6, %s4
  $region1: #{tpu_custom_call.1} parent=0
    #allocation2 [shape = 'u8[2048]{0}', space=vmem, size = 0x800, scoped, tag = 'input window, operand 0, single buffered']
    #allocation3 [shape = 's32[1]{0}', space=sflag, size = 0x4, scoped, tag = 'scoped memory for tpu_custom_call.1']
    #allocation4 [shape = 's32[1]{0}', space=sflag, size = 0x4, scoped, tag = 'scoped memory for tpu_custom_call.1']
    #allocation5 [shape = 'u8[8192]{0}', space=vmem, size = 0x2000, scoped, tag = 'input window, operand 1, single buffered']
    #allocation6 [shape = 's32[1]{0}', space=sflag, size = 0x4, scoped, tag = 'scoped memory for tpu_custom_call.1']
    #allocation7 [shape = 'u8[4096]{0}', space=vmem, size = 0x1000, scoped, tag = 'input window, operand 2, single buffered']
    #allocation8 [shape = 'u8[4096]{0}', space=vmem, size = 0x1000, scoped, tag = 'output window, operand 0, single buffered']
    %8 = vsyncpa [#allocation3], 0
    %9 = vsyncpa [#allocation6], 0
    %10 = vsyncpa [#allocation4], 0
    // Predicated region
    $region2: #{tpu_custom_call.1} parent=1 // pred_check
      _
    $region3: #{tpu_custom_call.1} parent=1 // pred_check_branch
      %12 = sbr.rel (0) target = $region5
    $region4: #{tpu_custom_call.1} parent=1 // pred_region
      %s14 = ssub.s32 64, 64
      %15 = vsyncadd [#allocation3], %s14
      %s17 = sshll.u32 [#allocation2], 4
      %s18 = int_to_ptr.vmem [resolvable:$true] %s17
      %20 = dma.hbm_to_vmem [thread:$0]  %s0, 64, %s18, [#allocation3]
    $region5: #{tpu_custom_call.1} parent=1 // pred_fallthru
      _
    // Predicated region
    $region6: #{tpu_custom_call.1} parent=1 // pred_check
      _
    $region7: #{tpu_custom_call.1} parent=1 // pred_check_branch
      %22 = sbr.rel (0) target = $region9
    $region8: #{tpu_custom_call.1} parent=1 // pred_region
      %s24 = ssub.s32 256, 256
      %25 = vsyncadd [#allocation6], %s24
      %s26 = sshll.u32 [#allocation5], 4
      %s27 = int_to_ptr.vmem [resolvable:$true] %s26
      %32 = dma.hbm_to_vmem [thread:$0]  %s1, 256, %s27, [#allocation6], 64, 64, 4
    $region9: #{tpu_custom_call.1} parent=1 // pred_fallthru
      _
    // Predicated region
    $region10: #{tpu_custom_call.1} parent=1 // pred_check
      _
    $region11: #{tpu_custom_call.1} parent=1 // pred_check_branch
      %34 = sbr.rel (0) target = $region13
    $region12: #{tpu_custom_call.1} parent=1 // pred_region
      %s36 = ssub.s32 128, 128
      %37 = vsyncadd [#allocation6], %s36
      %s39 = sshll.u32 [#allocation7], 4
      %s40 = int_to_ptr.vmem [resolvable:$true] %s39
      %42 = dma.hbm_to_vmem [thread:$0]  %s2, 128, %s40, [#allocation6]
    $region13: #{tpu_custom_call.1} parent=1 // pred_fallthru
      _
    // Predicated region
    $region14: #{tpu_custom_call.1} parent=1 // pred_check
      _
    $region15: #{tpu_custom_call.1} parent=1 // pred_check_branch
      %44 = sbr.rel (0) target = $region17
    $region16: #{tpu_custom_call.1} parent=1 // pred_region
      %45 = dma.done [#allocation3], 64
    $region17: #{tpu_custom_call.1} parent=1 // pred_fallthru
      _
    // Predicated region
    $region18: #{tpu_custom_call.1} parent=1 // pred_check
      _
    $region19: #{tpu_custom_call.1} parent=1 // pred_check_branch
      %47 = sbr.rel (0) target = $region21
    $region20: #{tpu_custom_call.1} parent=1 // pred_region
      %48 = dma.done [#allocation6], 256
    $region21: #{tpu_custom_call.1} parent=1 // pred_fallthru
      _
    // Predicated region
    $region22: #{tpu_custom_call.1} parent=1 // pred_check
      _
    $region23: #{tpu_custom_call.1} parent=1 // pred_check_branch
      %50 = sbr.rel (0) target = $region25
    $region24: #{tpu_custom_call.1} parent=1 // pred_region
      %51 = dma.done [#allocation6], 128
    $region25: #{tpu_custom_call.1} parent=1 // pred_fallthru
      _
    %v53 = vld [vmem:[#allocation2] sm:$0xf]
    %v54 = vld [vmem:[#allocation5] sm:$0xf]
    %v55 = vld [vmem:[#allocation5 + $0x4] sm:$0xf]
    %v56 = vld [vmem:[#allocation5 + $0x8] sm:$0xf]
    %v57 = vld [vmem:[#allocation5 + $0xc] sm:$0xf]
    %v58 = vld [vmem:[#allocation7] sm:$0x1]
    %v59 = vlaneseq
    %v60 = vshrl.u32 %v59, 7
    %v61 = vsub.s32 0, %v60
    %v62 = vrot.slane %v58, %v61
    %v67 = vunpack.c.l.b16 %v54
    %v68 = vunpack.c.l.b16 %v55
    %v69 = vunpack.c.l.b16 %v56
    %v70 = vunpack.c.l.b16 %v57
    %v71 = vpack.c.b16 %v68, %v67
    %v72 = vpack.c.b16 %v70, %v69
    %vm75 = vcmask 261120
    %v77 = vsel %vm75, %v53, 0
    %79 = vmatprep.subr.bf16.mxu0 0
    %80 = vmatpush1.bf16.msra.mxu0 0
    %81 = vmatprep.subr.bf16.mxu0 0
    %82 = vmatpush1.bf16.msra.mxu0 0
    %83 = vmatprep.subr.bf16.mxu0 0
    %84 = vmatpush1.bf16.msra.mxu0 0
    %85 = vmatprep.subr.bf16.mxu0 0
    %86 = vmatpush1.bf16.msra.mxu0 0
    %87 = vmatprep.subr.bf16.mxu0 0
    %88 = vmatpush1.bf16.msra.mxu0 0
    %89 = vmatprep.subr.bf16.mxu0 0
    %90 = vmatpush1.bf16.msra.mxu0 0
    %91 = vmatprep.subr.bf16.mxu0 0
    %92 = vmatpush1.bf16.msra.mxu0 %v72
    %93 = vmatprep.subr.bf16.mxu0 0
    %94 = vmatpush1.bf16.msra.mxu0 %v71
    %95 = vmatprep.subr.bf16.mxu0 0
    %96 = vmatpush2.bf16.msra.mxu0 0
    %97 = vmatprep.subr.bf16.mxu0 0
    %98 = vmatpush2.bf16.msra.mxu0 0
    %99 = vmatprep.subr.bf16.mxu0 0
    %100 = vmatpush2.bf16.msra.mxu0 0
    %101 = vmatprep.subr.bf16.mxu0 0
    %102 = vmatpush2.bf16.msra.mxu0 0
    %103 = vmatprep.subr.bf16.mxu0 0
    %104 = vmatpush2.bf16.msra.mxu0 0
    %105 = vmatprep.subr.bf16.mxu0 0
    %106 = vmatpush2.bf16.msra.mxu0 0
    %107 = vmatprep.subr.bf16.mxu0 0
    %108 = vmatpush2.bf16.msra.mxu0 0
    %109 = vmatprep.subr.bf16.mxu0 0
    %110 = vmatpush2.bf16.msra.mxu0 0
    %111 = vmatprep.mubr.bf16.mxu0 0
    %112 = vmatmul.mubr.bf16.gmra.mxu0 %v77
    %v113 = vpop.f32.mrf.mxu0
    %v114 = vadd.f32 %v62, %v113
    %v115 = vpop.f32.mrf.mxu0
    %v116 = vpop.f32.mrf.mxu0
    %v117 = vpop.f32.mrf.mxu0
    %118 = vdwg.mxu0
    %v119 = vtanh.pop %v114
    %v120 = vld [vmem:[#allocation7 + $0x1] sm:$0x1]
    %v121 = vld [vmem:[#allocation7 + $0x2] sm:$0x1]
    %v122 = vlaneseq
    %v123 = vshrl.u32 %v122, 7
    %v124 = vsub.s32 0, %v123
    %v125 = vrot.slane %v121, %v124
    %v126 = vmul.f32 %v119, %v125
    %v127 = vlaneseq
    %v128 = vshrl.u32 %v127, 7
    %v129 = vsub.s32 0, %v128
    %v130 = vrot.slane %v120, %v129
    %v131 = vadd.f32 %v130, %v126
    %132 = vst [vmem:[#allocation8] sm:$0xff] %v131
    // Predicated region
    $region26: #{tpu_custom_call.1} parent=1 // pred_check
      _
    $region27: #{tpu_custom_call.1} parent=1 // pred_check_branch
      %134 = sbr.rel (0) target = $region29
    $region28: #{tpu_custom_call.1} parent=1 // pred_region
      %s136 = ssub.s32 128, 128
      %137 = vsyncadd [#allocation4], %s136
      %s139 = sshll.u32 [#allocation8], 4
      %s140 = int_to_ptr.vmem [resolvable:$true] %s139
      %142 = dma.vmem_to_hbm [thread:$0]  %s140, 128, %s3, [#allocation4]
    $region29: #{tpu_custom_call.1} parent=1 // pred_fallthru
      _
    // Predicated region
    $region30: #{tpu_custom_call.1} parent=1 // pred_check
      _
    $region31: #{tpu_custom_call.1} parent=1 // pred_check_branch
      %144 = sbr.rel (0) target = $region33
    $region32: #{tpu_custom_call.1} parent=1 // pred_region
      %145 = dma.done [#allocation4], 128
    $region33: #{tpu_custom_call.1} parent=1 // pred_fallthru
      _
    %146 = vsyncpa [#allocation3], 1
    %147 = vsyncpa [#allocation6], 1
    %148 = vsyncpa [#allocation4], 1

</llo_original>
